<compile_context>
chip_gen: v6e
topology: v6e:2x2x1
jax: 0.10.0
libtpu: 0.0.40
codegen_flags: <defaults>
</compile_context>

<pallas_src>
import functools

import jax
import jax.numpy as jnp
from jax.experimental import pallas as pl
from jax.experimental.pallas import tpu as pltpu

KS = 3  # laplacian kernel size
_LAPLACIAN = ((1.0, 1.0, 1.0),
              (1.0, -8.0, 1.0),
              (1.0, 1.0, 1.0))


def _lap_conv_kernel(x_ref, w_ref, o_ref, *, H, W, per_channel):
    # x_ref: VMEM (rb, Lp)  rb flattened images (one image = H*W lanes)
    # w_ref: SMEM (9,) scalars (shared filter)  OR  VMEM (rb, 9) per-channel
    # o_ref: VMEM (rb, Lp)
    Lp = x_ref.shape[-1]
    x = x_ref[...]
    if x.dtype != jnp.float32:                 # accumulate in f32
        x = x.astype(jnp.float32)

    # Flat-index iota, computed once per block; (1, Lp) broadcasts on sublanes.
    pos = jax.lax.broadcasted_iota(jnp.int32, (1, Lp), 1)
    col = pos % W

    # Column pre-masked sources (2 selects shared by 3 taps each):
    #  * taps reading the right neighbour (oj=+1) must see source column 0
    #    as zero padding,
    #  * taps reading the left neighbour (oj=-1) must see column W-1 as zero.
    x_cp = jnp.where(col > 0, x, 0.0)          # source for all oj = +1 taps
    x_cm = jnp.where(col < W - 1, x, 0.0)      # source for all oj = -1 taps
    srcs = {-1: x_cm, 0: x, 1: x_cp}

    def tap_weight(k):
        if per_channel:
            return w_ref[:, k:k + 1]           # (rb, 1) lane-broadcast
        return w_ref[k]                        # SMEM scalar (fixed Laplacian)

    def tap(oi, oj):
        s = oi * W + oj                        # flat neighbour offset
        src = srcs[oj]
        if s == 0:
            return src
        # result[f] = src[(f + s) mod Lp] -- one XLU rotate, no VMEM copies.
        return pltpu.roll(src, shift=(-s) % Lp, axis=1)

    def group(oi):
        acc = None
        for oj in (-1, 0, 1):
            k = (oi + 1) * KS + (oj + 1)       # weight index di*3 + dj
            t = tap_weight(k) * tap(oi, oj)
            acc = t if acc is None else acc + t
        return acc

    # Row (H) boundaries: one select per vertical direction applied to the
    # already-summed group.  Wrapped / lane-padding reads of the rolls only
    # land on outputs these selects zero (or on the discarded padding tail).
    up = group(-1)     # reads the image row above  -> invalid on row 0
    mid = group(0)
    down = group(1)    # reads the image row below  -> invalid on row H-1
    out = (mid
           + jnp.where(pos >= W, up, 0.0)
           + jnp.where(pos < (H - 1) * W, down, 0.0))
    o_ref[...] = out.astype(o_ref.dtype)


def _vmem_limit_bytes():
    """Scoped-VMEM limit derived from the part (64 MiB v7x, 128 MiB v5e/v6e),
    with headroom, never below the 32 MiB default."""
    cap = 64 * 1024 * 1024                      # conservative fallback (v7x)
    try:
        cap = int(pltpu.get_tpu_info().vmem_capacity_bytes)
    except Exception:
        pass
    return max(32 * 1024 * 1024, min(96 * 1024 * 1024, (3 * cap) // 4))


def _pick_row_block(R, Lp, vmem_limit):
    """Rows (flattened images) per grid step.

    Budgeted with the f32 accumulation dtype (not the input itemsize):
    pipeline holds 2 double-buffered input + 2 output blocks, and the kernel
    keeps ~7 block-sized f32 values live (x, 2 pre-masked sources, rolled
    temporaries, 3 group accumulators).
    """
    lane_bytes = Lp * 4
    rb_io = (8 * 1024 * 1024) // (2 * lane_bytes)          # ~8 MiB I/O / step
    rb_vmem = (vmem_limit // 2) // ((4 + 7) * lane_bytes)  # VMEM headroom
    rb = min(R, max(8, min(rb_io, rb_vmem)))
    rb = max(8, (rb // 8) * 8)
    # Keep >= 2 grid steps when the rows allow it so the "parallel" axis can
    # shard across v7x's two TensorCores (per-step cost is noise on 1-TC
    # v5e/v6e, which otherwise take the whole problem in one block).
    if rb >= R and R >= 16:
        rb = max(8, (pl.cdiv(R, 2) // 8) * 8)
    return rb


def lap_conv(x, weight=None):
    """Forward of CSSNet's `lap_conv`: fixed 3x3 Laplacian high-pass applied
    depthwise (groups = band_ms) with zero padding 1, NCHW layout.

    x:      (N, C, H, W), float32 (bf16 accepted; accumulation stays f32).
    weight: None -> fixed Laplacian (the module's behaviour);
            (3, 3) shared filter (SMEM scalar path);
            (C, 3, 3) per-channel depthwise filter (VMEM fallback path).
    """
    N, C, H, W = x.shape
    if weight is None:
        weight = jnp.asarray(_LAPLACIAN, dtype=jnp.float32)
    weight = jnp.asarray(weight, dtype=jnp.float32)
    per_channel = weight.ndim == 3
    if per_channel:
        assert weight.shape == (C, KS, KS)
    else:
        assert weight.shape == (KS, KS)

    R, L = N * C, H * W
    Lp = ((L + 127) // 128) * 128              # lane-dense last dim
    Rp = ((R + 7) // 8) * 8                    # sublane-aligned rows

    x2 = x.reshape(R, L)                       # free reshape of contiguous NCHW
    if Lp != L or Rp != R:
        x2 = jnp.pad(x2, ((0, Rp - R), (0, Lp - L)))

    vmem_limit = _vmem_limit_bytes()
    rb = _pick_row_block(Rp, Lp, vmem_limit)
    grid = (pl.cdiv(Rp, rb),)

    kernel = functools.partial(_lap_conv_kernel, H=H, W=W,
                               per_channel=per_channel)

    if per_channel:
        # Fallback: per-row (= per-channel) tap table, blocked with the rows.
        w_arg = jnp.tile(weight.reshape(C, KS * KS), (N, 1))
        if Rp != R:
            w_arg = jnp.pad(w_arg, ((0, Rp - R), (0, 0)))
        w_spec = pl.BlockSpec((rb, KS * KS), lambda i: (i, 0))
    else:
        # Real lap_conv path: the 9 taps are SMEM scalars (no per-step DMA,
        # no lane-broadcasts in the kernel).
        w_arg = weight.reshape(KS * KS)
        w_spec = pl.BlockSpec(memory_space=pltpu.MemorySpace.SMEM)

    out2 = pl.pallas_call(
        kernel,
        out_shape=jax.ShapeDtypeStruct((Rp, Lp), x.dtype),
        grid=grid,
        in_specs=[pl.BlockSpec((rb, Lp), lambda i: (i, 0)), w_spec],
        out_specs=pl.BlockSpec((rb, Lp), lambda i: (i, 0)),
        compiler_params=pltpu.CompilerParams(
            dimension_semantics=("parallel",),
            vmem_limit_bytes=vmem_limit,
        ),
    )(x2, w_arg)

    if Lp != L or Rp != R:
        out2 = out2[:R, :L]
    return out2.reshape(N, C, H, W)


def lap_conv_ref(x, weight):
    """Pure-JAX reference (per-channel depthwise 3x3, zero padding 1)."""
    N, C, H, W = x.shape
    pad = KS // 2
    xp = jnp.pad(x, ((0, 0), (0, 0), (pad, pad), (pad, pad)))
    out = jnp.zeros((N, C, H, W), jnp.float32)
    for di in range(KS):
        for dj in range(KS):
            out = out + (weight[None, :, di, dj, None, None]
                         * xp[:, :, di:di + H, dj:dj + W])
    return out.astype(x.dtype)


if __name__ == "__main__":
    key = jax.random.PRNGKey(0)
    N, C, H, W = 2, 4, 16, 16  # band_ms = 4
    kx, kw = jax.random.split(key)
    x = jax.random.normal(kx, (N, C, H, W), dtype=jnp.float32)

    # 1) Module forward: fixed Laplacian high-pass shared across bands (SMEM path).
    out = lap_conv(x)
    jax.block_until_ready(out)
    lap = jnp.asarray(_LAPLACIAN, dtype=jnp.float32)
    ref = lap_conv_ref(x, jnp.broadcast_to(lap, (C, KS, KS)))
    assert out.shape == (N, C, H, W)
    assert jnp.allclose(out, ref, atol=1e-4, rtol=1e-4), "mismatch (laplacian)"

    # 2) Asymmetric shared filter: exercises every shift direction / boundary.
    w_shared = jax.random.normal(kw, (KS, KS), dtype=jnp.float32)
    out_s = lap_conv(x, w_shared)
    jax.block_until_ready(out_s)
    ref_s = lap_conv_ref(x, jnp.broadcast_to(w_shared, (C, KS, KS)))
    assert jnp.allclose(out_s, ref_s, atol=1e-4, rtol=1e-4), "mismatch (shared)"

    # 3) Per-channel fallback path (VMEM weight table).
    w_pc = jax.random.normal(jax.random.PRNGKey(1), (C, KS, KS), dtype=jnp.float32)
    out_pc = lap_conv(x, w_pc)
    jax.block_until_ready(out_pc)
    assert jnp.allclose(out_pc, lap_conv_ref(x, w_pc), atol=1e-4, rtol=1e-4), \
        "mismatch (per-channel)"

    print("KERNEL_OK")
</pallas_src>

<mosaic_0001>
module attributes {stable_mosaic.version = 11 : i64} {
  func.func @_lap_conv_kernel(%arg0: i32, %arg1: memref<8x256xf32, #tpu.memory_space<vmem>>, %arg2: memref<9xf32, #tpu.memory_space<smem>>, %arg3: memref<8x256xf32, #tpu.memory_space<vmem>>) attributes {dimension_semantics = [#tpu.dimension_semantics<parallel>], iteration_bounds = array<i64: 1>, scalar_prefetch = 0 : i64, scratch_operands = 0 : i64, tpu.core_type = #tpu.core_type<tc>, window_params = [{transform_indices = @transform_0, window_bounds = array<i64: 8, 256>}, {transform_indices = @transform_1, window_bounds = array<i64: 9>}, {transform_indices = @transform_2, window_bounds = array<i64: 8, 256>}]} {
    %c0 = arith.constant 0 : index
    %c0_0 = arith.constant 0 : index
    %0 = vector.load %arg1[%c0, %c0_0] : memref<8x256xf32, #tpu.memory_space<vmem>>, vector<8x256xf32>
    %1 = tpu.iota {dimensions = array<i32: 1>} : vector<1x256xi32>
    %c16_i32 = arith.constant 16 : i32
    %c0_i32 = arith.constant 0 : i32
    %2 = arith.cmpi eq, %c16_i32, %c0_i32 : i32
    %c1_i32 = arith.constant 1 : i32
    %3 = arith.select %2, %c1_i32, %c16_i32 : i32
    %4 = vector.broadcast %3 : i32 to vector<1x256xi32>
    %5 = arith.remsi %1, %4 : vector<1x256xi32>
    %c0_i32_1 = arith.constant 0 : i32
    %6 = vector.broadcast %c0_i32_1 : i32 to vector<1x256xi32>
    %7 = arith.cmpi ne, %5, %6 : vector<1x256xi32>
    %c0_i32_2 = arith.constant 0 : i32
    %8 = vector.broadcast %c0_i32_2 : i32 to vector<1x256xi32>
    %9 = arith.cmpi slt, %5, %8 : vector<1x256xi32>
    %c0_i32_3 = arith.constant 0 : i32
    %10 = arith.cmpi slt, %3, %c0_i32_3 : i32
    %11 = vector.broadcast %10 : i1 to vector<1x256xi1>
    %12 = vector.broadcast %11 : vector<1x256xi1> to vector<1x256xi1>
    %13 = arith.xori %9, %12 : vector<1x256xi1>
    %14 = arith.andi %13, %7 : vector<1x256xi1>
    %15 = vector.broadcast %3 : i32 to vector<1x256xi32>
    %16 = arith.addi %5, %15 : vector<1x256xi32>
    %17 = arith.select %14, %16, %5 : vector<1x256xi1>, vector<1x256xi32>
    %c0_i32_4 = arith.constant 0 : i32
    %18 = vector.broadcast %c0_i32_4 : i32 to vector<1x256xi32>
    %19 = arith.cmpi sgt, %17, %18 : vector<1x256xi32>
    %cst = arith.constant 0.000000e+00 : f32
    %20 = vector.shape_cast %19 : vector<1x256xi1> to vector<1x256xi1>
    %21 = vector.broadcast %20 : vector<1x256xi1> to vector<8x256xi1>
    %22 = vector.broadcast %cst : f32 to vector<8x256xf32>
    %23 = arith.select %21, %0, %22 : vector<8x256xi1>, vector<8x256xf32>
    %c15_i32 = arith.constant 15 : i32
    %24 = vector.broadcast %c15_i32 : i32 to vector<1x256xi32>
    %25 = arith.cmpi slt, %17, %24 : vector<1x256xi32>
    %cst_5 = arith.constant 0.000000e+00 : f32
    %26 = vector.shape_cast %25 : vector<1x256xi1> to vector<1x256xi1>
    %27 = vector.broadcast %26 : vector<1x256xi1> to vector<8x256xi1>
    %28 = vector.broadcast %cst_5 : f32 to vector<8x256xf32>
    %29 = arith.select %27, %0, %28 : vector<8x256xi1>, vector<8x256xf32>
    %c0_6 = arith.constant 0 : index
    %30 = memref.load %arg2[%c0_6] : memref<9xf32, #tpu.memory_space<smem>>
    %c17_i32 = arith.constant 17 : i32
    %31 = tpu.dynamic_rotate %29 by %c17_i32 dim 1 : vector<8x256xf32>, i32 -> vector<8x256xf32>
    %32 = vector.broadcast %30 : f32 to vector<8x256xf32>
    %33 = arith.mulf %32, %31 : vector<8x256xf32>
    %c1 = arith.constant 1 : index
    %34 = memref.load %arg2[%c1] : memref<9xf32, #tpu.memory_space<smem>>
    %c16_i32_7 = arith.constant 16 : i32
    %35 = tpu.dynamic_rotate %0 by %c16_i32_7 dim 1 : vector<8x256xf32>, i32 -> vector<8x256xf32>
    %36 = vector.broadcast %34 : f32 to vector<8x256xf32>
    %37 = arith.mulf %36, %35 : vector<8x256xf32>
    %38 = arith.addf %33, %37 : vector<8x256xf32>
    %c2 = arith.constant 2 : index
    %39 = memref.load %arg2[%c2] : memref<9xf32, #tpu.memory_space<smem>>
    %c15_i32_8 = arith.constant 15 : i32
    %40 = tpu.dynamic_rotate %23 by %c15_i32_8 dim 1 : vector<8x256xf32>, i32 -> vector<8x256xf32>
    %41 = vector.broadcast %39 : f32 to vector<8x256xf32>
    %42 = arith.mulf %41, %40 : vector<8x256xf32>
    %43 = arith.addf %38, %42 : vector<8x256xf32>
    %c3 = arith.constant 3 : index
    %44 = memref.load %arg2[%c3] : memref<9xf32, #tpu.memory_space<smem>>
    %c1_i32_9 = arith.constant 1 : i32
    %45 = tpu.dynamic_rotate %29 by %c1_i32_9 dim 1 : vector<8x256xf32>, i32 -> vector<8x256xf32>
    %46 = vector.broadcast %44 : f32 to vector<8x256xf32>
    %47 = arith.mulf %46, %45 : vector<8x256xf32>
    %c4 = arith.constant 4 : index
    %48 = memref.load %arg2[%c4] : memref<9xf32, #tpu.memory_space<smem>>
    %49 = vector.broadcast %48 : f32 to vector<8x256xf32>
    %50 = arith.mulf %49, %0 : vector<8x256xf32>
    %51 = arith.addf %47, %50 : vector<8x256xf32>
    %c5 = arith.constant 5 : index
    %52 = memref.load %arg2[%c5] : memref<9xf32, #tpu.memory_space<smem>>
    %c255_i32 = arith.constant 255 : i32
    %53 = tpu.dynamic_rotate %23 by %c255_i32 dim 1 : vector<8x256xf32>, i32 -> vector<8x256xf32>
    %54 = vector.broadcast %52 : f32 to vector<8x256xf32>
    %55 = arith.mulf %54, %53 : vector<8x256xf32>
    %56 = arith.addf %51, %55 : vector<8x256xf32>
    %c6 = arith.constant 6 : index
    %57 = memref.load %arg2[%c6] : memref<9xf32, #tpu.memory_space<smem>>
    %c241_i32 = arith.constant 241 : i32
    %58 = tpu.dynamic_rotate %29 by %c241_i32 dim 1 : vector<8x256xf32>, i32 -> vector<8x256xf32>
    %59 = vector.broadcast %57 : f32 to vector<8x256xf32>
    %60 = arith.mulf %59, %58 : vector<8x256xf32>
    %c7 = arith.constant 7 : index
    %61 = memref.load %arg2[%c7] : memref<9xf32, #tpu.memory_space<smem>>
    %c240_i32 = arith.constant 240 : i32
    %62 = tpu.dynamic_rotate %0 by %c240_i32 dim 1 : vector<8x256xf32>, i32 -> vector<8x256xf32>
    %63 = vector.broadcast %61 : f32 to vector<8x256xf32>
    %64 = arith.mulf %63, %62 : vector<8x256xf32>
    %65 = arith.addf %60, %64 : vector<8x256xf32>
    %c8 = arith.constant 8 : index
    %66 = memref.load %arg2[%c8] : memref<9xf32, #tpu.memory_space<smem>>
    %c239_i32 = arith.constant 239 : i32
    %67 = tpu.dynamic_rotate %23 by %c239_i32 dim 1 : vector<8x256xf32>, i32 -> vector<8x256xf32>
    %68 = vector.broadcast %66 : f32 to vector<8x256xf32>
    %69 = arith.mulf %68, %67 : vector<8x256xf32>
    %70 = arith.addf %65, %69 : vector<8x256xf32>
    %c16_i32_10 = arith.constant 16 : i32
    %71 = vector.broadcast %c16_i32_10 : i32 to vector<1x256xi32>
    %72 = arith.cmpi sge, %1, %71 : vector<1x256xi32>
    %cst_11 = arith.constant 0.000000e+00 : f32
    %73 = vector.shape_cast %72 : vector<1x256xi1> to vector<1x256xi1>
    %74 = vector.broadcast %73 : vector<1x256xi1> to vector<8x256xi1>
    %75 = vector.broadcast %cst_11 : f32 to vector<8x256xf32>
    %76 = arith.select %74, %43, %75 : vector<8x256xi1>, vector<8x256xf32>
    %77 = arith.addf %56, %76 : vector<8x256xf32>
    %c240_i32_12 = arith.constant 240 : i32
    %78 = vector.broadcast %c240_i32_12 : i32 to vector<1x256xi32>
    %79 = arith.cmpi slt, %1, %78 : vector<1x256xi32>
    %cst_13 = arith.constant 0.000000e+00 : f32
    %80 = vector.shape_cast %79 : vector<1x256xi1> to vector<1x256xi1>
    %81 = vector.broadcast %80 : vector<1x256xi1> to vector<8x256xi1>
    %82 = vector.broadcast %cst_13 : f32 to vector<8x256xf32>
    %83 = arith.select %81, %70, %82 : vector<8x256xi1>, vector<8x256xf32>
    %84 = arith.addf %77, %83 : vector<8x256xf32>
    %c0_14 = arith.constant 0 : index
    %c0_15 = arith.constant 0 : index
    %85 = vector.load %arg3[%c0_14, %c0_15] : memref<8x256xf32, #tpu.memory_space<vmem>>, vector<8x256xf32>
    tpu.vector_store %arg3[%c0_14, %c0_15], %84 {strides = array<i32>} : memref<8x256xf32, #tpu.memory_space<vmem>>, vector<8x256xf32>,
    return
  }
  func.func @transform_0(%arg0: i32) -> (i32, i32) {
    %c0_i32 = arith.constant 0 : i32
    %c0_i32_0 = arith.constant 0 : i32
    return %arg0, %c0_i32 : i32, i32
  }
  func.func @transform_1(%arg0: i32) -> i32 {
    %c0_i32 = arith.constant 0 : i32
    %c0_i32_0 = arith.constant 0 : i32
    return %c0_i32 : i32
  }
  func.func @transform_2(%arg0: i32) -> (i32, i32) {
    %c0_i32 = arith.constant 0 : i32
    %c0_i32_0 = arith.constant 0 : i32
    return %arg0, %c0_i32 : i32, i32
  }
}

</mosaic_0001>

<llo_original>
// kernel: tpu_custom_call.1
$region0: #{tpu_custom_call.1}
  #allocation0 [shape = 'u32[]', space=smem, size = 0x4, offset = 0x4, fixed_abs, tag = 'smem constant byte address 0x4 - core index']
  #allocation1 [shape = 'u32[144,128]{1,0:T(1,128)}', space=vmem, size = 0x12000, scoped, tag = 'internal scratch']
  %s0 = inlined_call_operand.hbm [shape: f32[8,256], index: 0, kind: input, shape index: {}]
  %s1 = inlined_call_operand.vmem [shape: f32[9], index: 1, kind: input, shape index: {}]
  %s2 = inlined_call_operand.hbm [shape: f32[8,256], index: 2, kind: output, shape index: {}]
  %s3 = sld [smem:[#allocation0]]
  $region26: #{tpu_custom_call.1} parent=0
    _
  %s5 = ssub.s32 1, %s3
  %s6 = scalar_select 0, %s5, %s3
  $region1: #{tpu_custom_call.1} parent=0
    #allocation2 [shape = 'u8[8192]{0}', space=vmem, size = 0x2000, scoped, tag = 'input window, operand 0, single buffered']
    #allocation3 [shape = 's32[1]{0}', space=sflag, size = 0x4, scoped, tag = 'scoped memory for tpu_custom_call.1']
    #allocation4 [shape = 's32[1]{0}', space=sflag, size = 0x4, scoped, tag = 'scoped memory for tpu_custom_call.1']
    #allocation5 [shape = 's32[1]{0}', space=sflag, size = 0x4, scoped, tag = 'scoped memory for tpu_custom_call.1']
    #allocation6 [shape = 'u8[512]{0}', space=smem, size = 0x200, scoped, tag = 'input window, operand 1, single buffered']
    #allocation7 [shape = 'u8[8192]{0}', space=vmem, size = 0x2000, scoped, tag = 'output window, operand 0, single buffered']
    %7 = vsyncpa [#allocation3], 0
    %8 = vsyncpa [#allocation5], 0
    %9 = vsyncpa [#allocation4], 0
    // Predicated region
    $region2: #{tpu_custom_call.1} parent=1 // pred_check
      _
    $region3: #{tpu_custom_call.1} parent=1 // pred_check_branch
      %11 = sbr.rel (0) target = $region5
    $region4: #{tpu_custom_call.1} parent=1 // pred_region
      %s13 = ssub.s32 256, 256
      %14 = vsyncadd [#allocation3], %s13
      %s16 = sshll.u32 [#allocation2], 4
      %s17 = int_to_ptr.vmem [resolvable:$true] %s16
      %19 = dma.hbm_to_vmem [thread:$0]  %s0, 256, %s17, [#allocation3]
    $region5: #{tpu_custom_call.1} parent=1 // pred_fallthru
      _
    // Predicated region
    $region6: #{tpu_custom_call.1} parent=1 // pred_check
      _
    $region7: #{tpu_custom_call.1} parent=1 // pred_check_branch
      %21 = sbr.rel (0) target = $region9
    $region8: #{tpu_custom_call.1} parent=1 // pred_region
      %s23 = ssub.s32 16, 16
      %24 = vsyncadd [#allocation5], %s23
      %s26 = sshll.u32 %s1, 4
      %s27 = int_to_ptr.vmem [resolvable:$true] %s26
      %29 = dma.vmem_to_smem %s27, 16, [#allocation6], [#allocation5]
    $region9: #{tpu_custom_call.1} parent=1 // pred_fallthru
      _
    // Predicated region
    $region10: #{tpu_custom_call.1} parent=1 // pred_check
      _
    $region11: #{tpu_custom_call.1} parent=1 // pred_check_branch
      %31 = sbr.rel (0) target = $region13
    $region12: #{tpu_custom_call.1} parent=1 // pred_region
      %32 = dma.done [#allocation3], 256
    $region13: #{tpu_custom_call.1} parent=1 // pred_fallthru
      _
    // Predicated region
    $region14: #{tpu_custom_call.1} parent=1 // pred_check
      _
    $region15: #{tpu_custom_call.1} parent=1 // pred_check_branch
      %34 = sbr.rel (0) target = $region17
    $region16: #{tpu_custom_call.1} parent=1 // pred_region
      %35 = dma.done [#allocation5], 16
    $region17: #{tpu_custom_call.1} parent=1 // pred_fallthru
      _
    %36 = sfence
    %v37 = vld [vmem:[#allocation2] sm:$0xff]
    %v38 = vld [vmem:[#allocation2 + $0x8] sm:$0xff]
    %v39 = vlaneseq
    %v40 = vand.u32 %v39, 127
    %v41 = vadd.s32 %v40, 128
    %vm42 = vcmp.lt.s32.totalorder %v40, 0
    %v43 = vsub.s32 0, %v40
    %v44 = vsel %vm42, %v43, %v40
    %v45 = vshrl.u32 %v44, 4
    %v46 = vand.u32 %v44, 15
    %v47 = vsub.s32 0, %v46
    %v48 = vsel %vm42, %v47, %v46
    %vm49 = vcmp.lt.s32.totalorder %v41, 0
    %v50 = vsub.s32 0, %v41
    %v51 = vsel %vm49, %v50, %v41
    %v52 = vshrl.u32 %v51, 4
    %v53 = vand.u32 %v51, 15
    %v54 = vsub.s32 0, %v53
    %v55 = vsel %vm49, %v54, %v53
    %vm56 = vcmp.ne.s32.totalorder %v48, 0
    %vm57 = vcmp.ne.s32.totalorder %v55, 0
    %vm58 = vcmp.lt.s32.totalorder %v48, 0
    %vm59 = vcmp.lt.s32.totalorder %v55, 0
    %vm60 = vmand %vm58, %vm56
    %vm61 = vmand %vm59, %vm57
    %v62 = vadd.s32 %v48, 16
    %v63 = vadd.s32 %v55, 16
    %v64 = vsel %vm60, %v62, %v48
    %v65 = vsel %vm61, %v63, %v55
    %vm66 = vcmp.gt.s32.totalorder %v64, 0
    %vm67 = vcmp.gt.s32.totalorder %v65, 0
    %v68 = vsel %vm66, 1, 0
    %v69 = vsel %vm67, 1, 0
    %vm70 = vcmp.eq.s32.totalorder %v68, 1
    %vm71 = vcmp.eq.s32.totalorder %v69, 1
    %v72 = vsel %vm70, %v37, 0.0
    %v73 = vsel %vm71, %v38, 0.0
    %vm74 = vcmp.lt.s32.totalorder %v64, 15
    %vm75 = vcmp.lt.s32.totalorder %v65, 15
    %v76 = vsel %vm74, 1, 0
    %v77 = vsel %vm75, 1, 0
    %vm78 = vcmp.eq.s32.totalorder %v76, 1
    %vm79 = vcmp.eq.s32.totalorder %v77, 1
    %v80 = vsel %vm78, %v37, 0.0
    %v81 = vsel %vm79, %v38, 0.0
    %s82 = sld [smem:[#allocation6]]
    %83 = vrot.lane.b32.xlu0 %v80, 17
    %v84 = vpop.permute.xlu0 %83
    %85 = vrot.lane.b32.xlu0 %v81, 17
    %v86 = vpop.permute.xlu0 %85
    %vm87 = vcmp.lt.s32.totalorder %v40, 17
    %v88 = vsel %vm87, %v84, %v86
    %v89 = vsel %vm87, %v86, %v84
    %v90 = vstv %s82
    %v91 = vmul.f32 %v90, %v89
    %v92 = vmul.f32 %v90, %v88
    %s93 = sld [smem:[#allocation6 + $0x1]]
    %94 = vrot.lane.b32.xlu0 %v37, 16
    %v95 = vpop.permute.xlu0 %94
    %96 = vrot.lane.b32.xlu0 %v38, 16
    %v97 = vpop.permute.xlu0 %96
    %vm98 = vcmp.lt.s32.totalorder %v40, 16
    %v99 = vsel %vm98, %v95, %v97
    %v100 = vsel %vm98, %v97, %v95
    %v101 = vstv %s93
    %v102 = vmul.f32 %v101, %v100
    %v103 = vmul.f32 %v101, %v99
    %v104 = vadd.f32 %v91, %v102
    %v105 = vadd.f32 %v92, %v103
    %s106 = sld [smem:[#allocation6 + $0x2]]
    %107 = vrot.lane.b32.xlu0 %v72, 15
    %v108 = vpop.permute.xlu0 %107
    %109 = vrot.lane.b32.xlu0 %v73, 15
    %v110 = vpop.permute.xlu0 %109
    %vm111 = vcmp.lt.s32.totalorder %v40, 15
    %v112 = vsel %vm111, %v108, %v110
    %v113 = vsel %vm111, %v110, %v108
    %v114 = vstv %s106
    %v115 = vmul.f32 %v114, %v113
    %v116 = vmul.f32 %v114, %v112
    %v117 = vadd.f32 %v104, %v115
    %v118 = vadd.f32 %v105, %v116
    %s119 = sld [smem:[#allocation6 + $0x3]]
    %120 = vrot.lane.b32.xlu0 %v80, 1
    %v121 = vpop.permute.xlu0 %120
    %122 = vrot.lane.b32.xlu0 %v81, 1
    %v123 = vpop.permute.xlu0 %122
    %vm124 = vcmp.lt.s32.totalorder %v40, 1
    %v125 = vsel %vm124, %v121, %v123
    %v126 = vsel %vm124, %v123, %v121
    %v127 = vstv %s119
    %v128 = vmul.f32 %v127, %v126
    %v129 = vmul.f32 %v127, %v125
    %s130 = sld [smem:[#allocation6 + $0x4]]
    %v131 = vstv %s130
    %v132 = vmul.f32 %v131, %v37
    %v133 = vmul.f32 %v131, %v38
    %v134 = vadd.f32 %v128, %v132
    %v135 = vadd.f32 %v129, %v133
    %s136 = sld [smem:[#allocation6 + $0x5]]
    %137 = vrot.lane.b32.xlu0 %v72, 127
    %v138 = vpop.permute.xlu0 %137
    %139 = vrot.lane.b32.xlu0 %v73, 127
    %v140 = vpop.permute.xlu0 %139
    %vm141 = vcmp.lt.s32.totalorder %v40, 127
    %v142 = vsel %vm141, %v138, %v140
    %v143 = vsel %vm141, %v140, %v138
    %v144 = vstv %s136
    %v145 = vmul.f32 %v144, %v142
    %v146 = vmul.f32 %v144, %v143
    %v147 = vadd.f32 %v134, %v145
    %v148 = vadd.f32 %v135, %v146
    %s149 = sld [smem:[#allocation6 + $0x6]]
    %150 = vrot.lane.b32.xlu0 %v80, 113
    %v151 = vpop.permute.xlu0 %150
    %152 = vrot.lane.b32.xlu0 %v81, 113
    %v153 = vpop.permute.xlu0 %152
    %vm154 = vcmp.lt.s32.totalorder %v40, 113
    %v155 = vsel %vm154, %v151, %v153
    %v156 = vsel %vm154, %v153, %v151
    %v157 = vstv %s149
    %v158 = vmul.f32 %v157, %v155
    %v159 = vmul.f32 %v157, %v156
    %s160 = sld [smem:[#allocation6 + $0x7]]
    %161 = vrot.lane.b32.xlu0 %v37, 112
    %v162 = vpop.permute.xlu0 %161
    %163 = vrot.lane.b32.xlu0 %v38, 112
    %v164 = vpop.permute.xlu0 %163
    %vm165 = vcmp.lt.s32.totalorder %v40, 112
    %v166 = vsel %vm165, %v162, %v164
    %v167 = vsel %vm165, %v164, %v162
    %v168 = vstv %s160
    %v169 = vmul.f32 %v168, %v166
    %v170 = vmul.f32 %v168, %v167
    %v171 = vadd.f32 %v158, %v169
    %v172 = vadd.f32 %v159, %v170
    %s173 = sld [smem:[#allocation6 + $0x8]]
    %174 = vrot.lane.b32.xlu0 %v72, 111
    %v175 = vpop.permute.xlu0 %174
    %176 = vrot.lane.b32.xlu0 %v73, 111
    %v177 = vpop.permute.xlu0 %176
    %vm178 = vcmp.lt.s32.totalorder %v40, 111
    %v179 = vsel %vm178, %v175, %v177
    %v180 = vsel %vm178, %v177, %v175
    %v181 = vstv %s173
    %v182 = vmul.f32 %v181, %v179
    %v183 = vmul.f32 %v181, %v180
    %v184 = vadd.f32 %v171, %v182
    %v185 = vadd.f32 %v172, %v183
    %vm186 = vcmp.ge.s32.totalorder %v40, 16
    %vm187 = vcmp.ge.s32.totalorder %v41, 16
    %v188 = vsel %vm186, 1, 0
    %v189 = vsel %vm187, 1, 0
    %vm190 = vcmp.eq.s32.totalorder %v188, 1
    %vm191 = vcmp.eq.s32.totalorder %v189, 1
    %v192 = vsel %vm190, %v117, 0.0
    %v193 = vsel %vm191, %v118, 0.0
    %v194 = vadd.f32 %v147, %v192
    %v195 = vadd.f32 %v148, %v193
    %vm196 = vcmp.lt.s32.totalorder %v40, 240
    %vm197 = vcmp.lt.s32.totalorder %v41, 240
    %v198 = vsel %vm196, 1, 0
    %v199 = vsel %vm197, 1, 0
    %vm200 = vcmp.eq.s32.totalorder %v198, 1
    %vm201 = vcmp.eq.s32.totalorder %v199, 1
    %v202 = vsel %vm200, %v184, 0.0
    %v203 = vsel %vm201, %v185, 0.0
    %v204 = vadd.f32 %v194, %v202
    %v205 = vadd.f32 %v195, %v203
    %206 = vst [vmem:[#allocation7] sm:$0xff] %v204
    %207 = vst [vmem:[#allocation7 + $0x8] sm:$0xff] %v205
    // Predicated region
    $region18: #{tpu_custom_call.1} parent=1 // pred_check
      _
    $region19: #{tpu_custom_call.1} parent=1 // pred_check_branch
      %209 = sbr.rel (0) target = $region21
    $region20: #{tpu_custom_call.1} parent=1 // pred_region
      %s211 = ssub.s32 256, 256
      %212 = vsyncadd [#allocation4], %s211
      %s214 = sshll.u32 [#allocation7], 4
      %s215 = int_to_ptr.vmem [resolvable:$true] %s214
      %217 = dma.vmem_to_hbm [thread:$0]  %s215, 256, %s2, [#allocation4]
    $region21: #{tpu_custom_call.1} parent=1 // pred_fallthru
      _
    // Predicated region
    $region22: #{tpu_custom_call.1} parent=1 // pred_check
      _
    $region23: #{tpu_custom_call.1} parent=1 // pred_check_branch
      %219 = sbr.rel (0) target = $region25
    $region24: #{tpu_custom_call.1} parent=1 // pred_region
      %220 = dma.done [#allocation4], 256
    $region25: #{tpu_custom_call.1} parent=1 // pred_fallthru
      _
    %221 = vsyncpa [#allocation3], 1
    %222 = vsyncpa [#allocation4], 1
    %223 = vsyncpa [#allocation5], 1

</llo_original>
